<compile_context>
chip_gen: v5e
topology: v5e:2x2
jax: 0.10.0
libtpu: 0.0.40
codegen_flags: <defaults>
</compile_context>

<pallas_src>
import jax
import jax.numpy as jnp
from jax.experimental import pallas as pl
from jax.experimental.pallas import tpu as pltpu


def toy_mlp_kernel(x_ref, w1_ref, b1_ref, w2_ref, b2_ref, o_ref):
    # net1: h = relu(x @ W1^T + b1)   (weights pre-transposed in the wrapper)
    h = jnp.dot(x_ref[...], w1_ref[...], preferred_element_type=jnp.float32)
    h = jnp.maximum(h + b1_ref[...], 0.0)                  # (TB, 10) + (1, 10)
    # net2: y = h @ W2^T + b2
    y = jnp.dot(h, w2_ref[...], preferred_element_type=jnp.float32)
    o_ref[...] = (y + b2_ref[...]).astype(o_ref.dtype)     # (TB, 5) + (1, 5)


def toy_model_forward(x, w1, b1, w2, b2, *, tb_max=2048):
    """x: (B, 10) f32.
    w1: (10, 10) PyTorch layout (out, in); b1: (10,)
    w2: (5, 10)  PyTorch layout (out, in); b2: (5,)
    returns (B, 5) f32
    """
    B, in_f = x.shape
    hid = w1.shape[0]
    out_f = w2.shape[0]

    # Batch tile: multiple of 8 (sublane), capped at tb_max. Moderate tiles keep
    # the double-buffered footprint to a few hundred KB (well inside every
    # generation's scoped-VMEM default) while TB >= ~1024 amortizes the
    # ~0.35 us per-grid-step overhead for large batches.
    tb = min(tb_max, max(8, ((B + 7) // 8) * 8))
    n_tiles = pl.cdiv(B, tb)
    b_pad = n_tiles * tb
    if b_pad != B:
        x = jnp.pad(x, ((0, b_pad - B), (0, 0)))

    w1_t = w1.T                      # (in=10, out=10)
    w2_t = w2.T                      # (in=10, out=5)
    b1_2d = b1.reshape(1, hid)       # (1, 10)
    b2_2d = b2.reshape(1, out_f)     # (1, 5)

    out = pl.pallas_call(
        toy_mlp_kernel,
        out_shape=jax.ShapeDtypeStruct((b_pad, out_f), jnp.float32),
        grid_spec=pl.GridSpec(
            grid=(n_tiles,),
            in_specs=[
                pl.BlockSpec((tb, in_f), lambda i: (i, 0)),     # x: batch-tiled
                pl.BlockSpec((in_f, hid), lambda i: (0, 0)),    # W1^T: resident
                pl.BlockSpec((1, hid), lambda i: (0, 0)),       # b1: resident
                pl.BlockSpec((hid, out_f), lambda i: (0, 0)),   # W2^T: resident
                pl.BlockSpec((1, out_f), lambda i: (0, 0)),     # b2: resident
            ],
            out_specs=pl.BlockSpec((tb, out_f), lambda i: (i, 0)),
        ),
        compiler_params=pltpu.CompilerParams(
            # Batch tiles are independent -> shard across TensorCores on v7x.
            dimension_semantics=("parallel",),
        ),
    )(x, w1_t, b1_2d, w2_t, b2_2d)
    return out[:B]


if __name__ == "__main__":
    key = jax.random.PRNGKey(0)
    k_x, k_w1, k_b1, k_w2, k_b2 = jax.random.split(key, 5)

    # Non-multiple-of-8 batch exercises the pad/slice path.
    B, IN, HID, OUT = 37, 10, 10, 5

    x = jax.random.normal(k_x, (B, IN), dtype=jnp.float32)

    # Deterministic parameter init (mimicking nn.Linear's uniform bound 1/sqrt(fan_in))
    bound1 = 1.0 / jnp.sqrt(IN)
    w1 = jax.random.uniform(k_w1, (HID, IN), minval=-bound1, maxval=bound1,
                            dtype=jnp.float32)
    b1 = jax.random.uniform(k_b1, (HID,), minval=-bound1, maxval=bound1,
                            dtype=jnp.float32)
    bound2 = 1.0 / jnp.sqrt(HID)
    w2 = jax.random.uniform(k_w2, (OUT, HID), minval=-bound2, maxval=bound2,
                            dtype=jnp.float32)
    b2 = jax.random.uniform(k_b2, (OUT,), minval=-bound2, maxval=bound2,
                            dtype=jnp.float32)

    # tb_max=16 -> batch padded to 48, grid=(3,): exercises the pipelined,
    # multi-step batch tiling at a small test size.
    out = toy_model_forward(x, w1, b1, w2, b2, tb_max=16)
    out = jax.block_until_ready(out)

    # Reference check against plain JAX (same math as the PyTorch module).
    ref = jnp.maximum(x @ w1.T + b1, 0.0) @ w2.T + b2
    assert out.shape == (B, OUT)
    assert jnp.allclose(out, ref, atol=1e-5, rtol=1e-5)

    print("KERNEL_OK")
</pallas_src>

<mosaic_0001>
module attributes {stable_mosaic.version = 11 : i64} {
  func.func @toy_mlp_kernel(%arg0: i32, %arg1: memref<16x10xf32, #tpu.memory_space<vmem>>, %arg2: memref<10x10xf32, #tpu.memory_space<vmem>>, %arg3: memref<1x10xf32, #tpu.memory_space<vmem>>, %arg4: memref<10x5xf32, #tpu.memory_space<vmem>>, %arg5: memref<1x5xf32, #tpu.memory_space<vmem>>, %arg6: memref<16x5xf32, #tpu.memory_space<vmem>>) attributes {dimension_semantics = [#tpu.dimension_semantics<parallel>], iteration_bounds = array<i64: 3>, scalar_prefetch = 0 : i64, scratch_operands = 0 : i64, tpu.core_type = #tpu.core_type<tc>, window_params = [{transform_indices = @transform_0, window_bounds = array<i64: 16, 10>}, {pipeline_mode = #tpu.pipeline_mode<synchronous>, transform_indices = @transform_1, window_bounds = array<i64: 10, 10>}, {pipeline_mode = #tpu.pipeline_mode<synchronous>, transform_indices = @transform_2, window_bounds = array<i64: 1, 10>}, {pipeline_mode = #tpu.pipeline_mode<synchronous>, transform_indices = @transform_3, window_bounds = array<i64: 10, 5>}, {pipeline_mode = #tpu.pipeline_mode<synchronous>, transform_indices = @transform_4, window_bounds = array<i64: 1, 5>}, {transform_indices = @transform_5, window_bounds = array<i64: 16, 5>}]} {
    %c0 = arith.constant 0 : index
    %c0_0 = arith.constant 0 : index
    %0 = vector.load %arg1[%c0, %c0_0] : memref<16x10xf32, #tpu.memory_space<vmem>>, vector<16x10xf32>
    %c0_1 = arith.constant 0 : index
    %c0_2 = arith.constant 0 : index
    %1 = vector.load %arg2[%c0_1, %c0_2] : memref<10x10xf32, #tpu.memory_space<vmem>>, vector<10x10xf32>
    %cst = arith.constant dense<0.000000e+00> : vector<16x10xf32>
    %2 = tpu.matmul %0, %1, %cst {dimension_numbers = #tpu.dot_dimension_numbers<[1], [0], [0], [1], [0, 0, 1, 1], [], []>} : vector<16x10xf32>, vector<10x10xf32>, vector<16x10xf32> -> vector<16x10xf32>
    %c0_3 = arith.constant 0 : index
    %c0_4 = arith.constant 0 : index
    %3 = vector.load %arg3[%c0_3, %c0_4] : memref<1x10xf32, #tpu.memory_space<vmem>>, vector<1x10xf32>
    %4 = vector.broadcast %3 : vector<1x10xf32> to vector<16x10xf32>
    %5 = arith.addf %2, %4 : vector<16x10xf32>
    %cst_5 = arith.constant 0.000000e+00 : f32
    %6 = vector.broadcast %cst_5 : f32 to vector<16x10xf32>
    %7 = arith.maximumf %5, %6 : vector<16x10xf32>
    %c0_6 = arith.constant 0 : index
    %c0_7 = arith.constant 0 : index
    %8 = vector.load %arg4[%c0_6, %c0_7] : memref<10x5xf32, #tpu.memory_space<vmem>>, vector<10x5xf32>
    %cst_8 = arith.constant dense<0.000000e+00> : vector<16x5xf32>
    %9 = tpu.matmul %7, %8, %cst_8 {dimension_numbers = #tpu.dot_dimension_numbers<[1], [0], [0], [1], [0, 0, 1, 1], [], []>} : vector<16x10xf32>, vector<10x5xf32>, vector<16x5xf32> -> vector<16x5xf32>
    %c0_9 = arith.constant 0 : index
    %c0_10 = arith.constant 0 : index
    %10 = vector.load %arg5[%c0_9, %c0_10] : memref<1x5xf32, #tpu.memory_space<vmem>>, vector<1x5xf32>
    %11 = vector.broadcast %10 : vector<1x5xf32> to vector<16x5xf32>
    %12 = arith.addf %9, %11 : vector<16x5xf32>
    %c0_11 = arith.constant 0 : index
    %c0_12 = arith.constant 0 : index
    %13 = vector.load %arg6[%c0_11, %c0_12] : memref<16x5xf32, #tpu.memory_space<vmem>>, vector<16x5xf32>
    tpu.vector_store %arg6[%c0_11, %c0_12], %12 {strides = array<i32>} : memref<16x5xf32, #tpu.memory_space<vmem>>, vector<16x5xf32>,
    return
  }
  func.func @transform_0(%arg0: i32) -> (i32, i32) {
    %c0_i32 = arith.constant 0 : i32
    %c0_i32_0 = arith.constant 0 : i32
    return %arg0, %c0_i32 : i32, i32
  }
  func.func @transform_1(%arg0: i32) -> (i32, i32) {
    %c0_i32 = arith.constant 0 : i32
    %c0_i32_0 = arith.constant 0 : i32
    %c0_i32_1 = arith.constant 0 : i32
    return %c0_i32, %c0_i32_0 : i32, i32
  }
  func.func @transform_2(%arg0: i32) -> (i32, i32) {
    %c0_i32 = arith.constant 0 : i32
    %c0_i32_0 = arith.constant 0 : i32
    %c0_i32_1 = arith.constant 0 : i32
    return %c0_i32, %c0_i32_0 : i32, i32
  }
  func.func @transform_3(%arg0: i32) -> (i32, i32) {
    %c0_i32 = arith.constant 0 : i32
    %c0_i32_0 = arith.constant 0 : i32
    %c0_i32_1 = arith.constant 0 : i32
    return %c0_i32, %c0_i32_0 : i32, i32
  }
  func.func @transform_4(%arg0: i32) -> (i32, i32) {
    %c0_i32 = arith.constant 0 : i32
    %c0_i32_0 = arith.constant 0 : i32
    %c0_i32_1 = arith.constant 0 : i32
    return %c0_i32, %c0_i32_0 : i32, i32
  }
  func.func @transform_5(%arg0: i32) -> (i32, i32) {
    %c0_i32 = arith.constant 0 : i32
    %c0_i32_0 = arith.constant 0 : i32
    return %arg0, %c0_i32 : i32, i32
  }
}

</mosaic_0001>

<llo_original>
// kernel: tpu_custom_call.1
$region0: #{tpu_custom_call.1}
  #allocation0 [shape = 'u32[]', space=smem, size = 0x4, offset = 0x4, fixed_abs, tag = 'smem constant byte address 0x4 - core index']
  #allocation1 [shape = 'u32[72,128]{1,0:T(1,128)}', space=vmem, size = 0x9000, scoped, tag = 'internal scratch']
  %s0 = inlined_call_operand.vmem [shape: f32[48,10], index: 0, kind: input, shape index: {}]
  %s1 = inlined_call_operand.vmem [shape: f32[10,10], index: 1, kind: input, shape index: {}]
  %s2 = inlined_call_operand.vmem [shape: f32[1,10], index: 2, kind: input, shape index: {}]
  %s3 = inlined_call_operand.vmem [shape: f32[10,5], index: 3, kind: input, shape index: {}]
  %s4 = inlined_call_operand.vmem [shape: f32[1,5], index: 4, kind: input, shape index: {}]
  %s5 = inlined_call_operand.vmem [shape: f32[48,5], index: 5, kind: output, shape index: {}]
  %s6 = sld [smem:[#allocation0]]
  $region53: #{tpu_custom_call.1} parent=0
    _
  %s8 = ssub.s32 1, %s6
  %s9 = scalar_select 0, %s8, %s6
  loop: start=0, step=1, limit=5
  $region2: #{tpu_custom_call.1} parent=0 // loop_pre_header
    _
  $region3: #{tpu_custom_call.1} parent=0 // loop_header
    %s11 = sphi 0, %s15
    %p12 = scmp.ge.s32.totalorder %s11, 5
    %s21 = sphi 0, %s23
    %s24 = sphi 0, %s21
    %s25 = sphi 0, %s24
    %s41 = sphi 0, %s25
    %s45 = sphi 0, %s45
    %s47 = sphi 0, %s45
    %s48 = sphi 0, %s47
    %s62 = sphi 0, %s48
    %s66 = sphi 0, %s66
    %s68 = sphi 0, %s66
    %s69 = sphi 0, %s68
    %s83 = sphi 0, %s69
    %s87 = sphi 0, %s87
    %s89 = sphi 0, %s87
    %s90 = sphi 0, %s89
    %s104 = sphi 0, %s90
    %s108 = sphi 0, %s108
    %s110 = sphi 0, %s108
    %s111 = sphi 0, %s110
    %s125 = sphi 0, %s111
    %s131 = sphi 0, %s133
    %s134 = sphi 0, %s131
    %s135 = sphi 0, %s134
    %s151 = sphi 0, %s135
  $region4: #{tpu_custom_call.1} parent=0 // loop_header_branch
    %14 = sbr.rel (%p12) target = $region8
  $region5: #{tpu_custom_call.1} parent=0 // loop_body
    %s16 = ssub.s32 %s11, 1
    %s17 = ssub.s32 %s11, 2
    %s18 = sadd.s32 %s11, 1
    %s19 = ssub.s32 %s11, %s18
    %p20 = scmp.eq.s32.totalorder %s19, 0
    %s22 = sadd.s32 %s21, 1
    %s23 = scalar_select %p20, %s21, %s22
    %p26 = pneg %p20
    %p27 = scmp.eq.s32.totalorder %s11, 2
    %p28 = por %p26, %p27
    %p29 = scmp.ne.s32.totalorder %s21, %s24
    %p30 = scmp.eq.s32.totalorder %s11, 0
    %p31 = por %p29, %p30
    %p32 = scmp.ne.s32.totalorder %s21, %s24
    %p33 = scmp.eq.s32.totalorder %s16, 2
    %p34 = por %p32, %p33
    %p35 = scmp.ne.s32.totalorder %s24, %s25
    %p36 = scmp.eq.s32.totalorder %s16, 0
    %p37 = por %p35, %p36
    %p38 = scmp.ne.s32.totalorder %s24, %s25
    %p39 = scmp.eq.s32.totalorder %s17, 2
    %p40 = por %p38, %p39
    %p42 = scmp.ne.s32.totalorder %s25, %s41
    %p43 = scmp.eq.s32.totalorder %s17, 0
    %p44 = por %p42, %p43
    %s46 = sadd.s32 %s45, 1
    %p49 = scmp.eq.s32.totalorder %s11, 2
    %p50 = scmp.ne.s32.totalorder %s45, %s47
    %p51 = scmp.eq.s32.totalorder %s11, 0
    %p52 = por %p50, %p51
    %p53 = scmp.ne.s32.totalorder %s45, %s47
    %p54 = scmp.eq.s32.totalorder %s16, 2
    %p55 = por %p53, %p54
    %p56 = scmp.ne.s32.totalorder %s47, %s48
    %p57 = scmp.eq.s32.totalorder %s16, 0
    %p58 = por %p56, %p57
    %p59 = scmp.ne.s32.totalorder %s47, %s48
    %p60 = scmp.eq.s32.totalorder %s17, 2
    %p61 = por %p59, %p60
    %p63 = scmp.ne.s32.totalorder %s48, %s62
    %p64 = scmp.eq.s32.totalorder %s17, 0
    %p65 = por %p63, %p64
    %s67 = sadd.s32 %s66, 1
    %p70 = scmp.eq.s32.totalorder %s11, 2
    %p71 = scmp.ne.s32.totalorder %s66, %s68
    %p72 = scmp.eq.s32.totalorder %s11, 0
    %p73 = por %p71, %p72
    %p74 = scmp.ne.s32.totalorder %s66, %s68
    %p75 = scmp.eq.s32.totalorder %s16, 2
    %p76 = por %p74, %p75
    %p77 = scmp.ne.s32.totalorder %s68, %s69
    %p78 = scmp.eq.s32.totalorder %s16, 0
    %p79 = por %p77, %p78
    %p80 = scmp.ne.s32.totalorder %s68, %s69
    %p81 = scmp.eq.s32.totalorder %s17, 2
    %p82 = por %p80, %p81
    %p84 = scmp.ne.s32.totalorder %s69, %s83
    %p85 = scmp.eq.s32.totalorder %s17, 0
    %p86 = por %p84, %p85
    %s88 = sadd.s32 %s87, 1
    %p91 = scmp.eq.s32.totalorder %s11, 2
    %p92 = scmp.ne.s32.totalorder %s87, %s89
    %p93 = scmp.eq.s32.totalorder %s11, 0
    %p94 = por %p92, %p93
    %p95 = scmp.ne.s32.totalorder %s87, %s89
    %p96 = scmp.eq.s32.totalorder %s16, 2
    %p97 = por %p95, %p96
    %p98 = scmp.ne.s32.totalorder %s89, %s90
    %p99 = scmp.eq.s32.totalorder %s16, 0
    %p100 = por %p98, %p99
    %p101 = scmp.ne.s32.totalorder %s89, %s90
    %p102 = scmp.eq.s32.totalorder %s17, 2
    %p103 = por %p101, %p102
    %p105 = scmp.ne.s32.totalorder %s90, %s104
    %p106 = scmp.eq.s32.totalorder %s17, 0
    %p107 = por %p105, %p106
    %s109 = sadd.s32 %s108, 1
    %p112 = scmp.eq.s32.totalorder %s11, 2
    %p113 = scmp.ne.s32.totalorder %s108, %s110
    %p114 = scmp.eq.s32.totalorder %s11, 0
    %p115 = por %p113, %p114
    %p116 = scmp.ne.s32.totalorder %s108, %s110
    %p117 = scmp.eq.s32.totalorder %s16, 2
    %p118 = por %p116, %p117
    %p119 = scmp.ne.s32.totalorder %s110, %s111
    %p120 = scmp.eq.s32.totalorder %s16, 0
    %p121 = por %p119, %p120
    %p122 = scmp.ne.s32.totalorder %s110, %s111
    %p123 = scmp.eq.s32.totalorder %s17, 2
    %p124 = por %p122, %p123
    %p126 = scmp.ne.s32.totalorder %s111, %s125
    %p127 = scmp.eq.s32.totalorder %s17, 0
    %p128 = por %p126, %p127
    %s129 = ssub.s32 %s11, %s18
    %p130 = scmp.eq.s32.totalorder %s129, 0
    %s132 = sadd.s32 %s131, 1
    %s133 = scalar_select %p130, %s131, %s132
    %p136 = pneg %p130
    %p137 = scmp.eq.s32.totalorder %s11, 2
    %p138 = por %p136, %p137
    %p139 = scmp.ne.s32.totalorder %s131, %s134
    %p140 = scmp.eq.s32.totalorder %s11, 0
    %p141 = por %p139, %p140
    %p142 = scmp.ne.s32.totalorder %s131, %s134
    %p143 = scmp.eq.s32.totalorder %s16, 2
    %p144 = por %p142, %p143
    %p145 = scmp.ne.s32.totalorder %s134, %s135
    %p146 = scmp.eq.s32.totalorder %s16, 0
    %p147 = por %p145, %p146
    %p148 = scmp.ne.s32.totalorder %s134, %s135
    %p149 = scmp.eq.s32.totalorder %s17, 2
    %p150 = por %p148, %p149
    %p152 = scmp.ne.s32.totalorder %s135, %s151
    %p153 = scmp.eq.s32.totalorder %s17, 0
    %p154 = por %p152, %p153
    %p155 = scmp.le.s32.totalorder 1, %s11
    %p156 = scmp.lt.s32.totalorder %s11, 4
    %p157 = pnand %p155, %p156
    %p158 = pneg %p157
    // Predicated region
    $region9: #{tpu_custom_call.1} parent=5 // pred_check
      _
    $region10: #{tpu_custom_call.1} parent=5 // pred_check_branch
      %160 = sbr.rel (%p157) target = $region12
    $region11: #{tpu_custom_call.1} parent=5 // pred_region
      %s161 = ssub.s32 %s11, 1
      // Predicated region
      $region13: #{tpu_custom_call.1} parent=11 // pred_check
        %p162 = pneg %p58
      $region14: #{tpu_custom_call.1} parent=11 // pred_check_branch
        %164 = sbr.rel (%p162) target = $region16
      $region15: #{tpu_custom_call.1} parent=11 // pred_region
        _
      $region16: #{tpu_custom_call.1} parent=11 // pred_fallthru
        _
      // Predicated region
      $region17: #{tpu_custom_call.1} parent=11 // pred_check
        %p165 = pneg %p79
      $region18: #{tpu_custom_call.1} parent=11 // pred_check_branch
        %167 = sbr.rel (%p165) target = $region20
      $region19: #{tpu_custom_call.1} parent=11 // pred_region
        _
      $region20: #{tpu_custom_call.1} parent=11 // pred_fallthru
        _
      // Predicated region
      $region21: #{tpu_custom_call.1} parent=11 // pred_check
        %p168 = pneg %p100
      $region22: #{tpu_custom_call.1} parent=11 // pred_check_branch
        %170 = sbr.rel (%p168) target = $region24
      $region23: #{tpu_custom_call.1} parent=11 // pred_region
        _
      $region24: #{tpu_custom_call.1} parent=11 // pred_fallthru
        _
      // Predicated region
      $region25: #{tpu_custom_call.1} parent=11 // pred_check
        %p171 = pneg %p121
      $region26: #{tpu_custom_call.1} parent=11 // pred_check_branch
        %173 = sbr.rel (%p171) target = $region28
      $region27: #{tpu_custom_call.1} parent=11 // pred_region
        _
      $region28: #{tpu_custom_call.1} parent=11 // pred_fallthru
        _
    $region12: #{tpu_custom_call.1} parent=5 // pred_fallthru
      _
    %p174 = scmp.lt.s32.totalorder %s11, 3
    // Predicated region
    $region29: #{tpu_custom_call.1} parent=5 // pred_check
      %p175 = pneg %p174
    $region30: #{tpu_custom_call.1} parent=5 // pred_check_branch
      %177 = sbr.rel (%p175) target = $region32
    $region31: #{tpu_custom_call.1} parent=5 // pred_region
      // Predicated region
      $region33: #{tpu_custom_call.1} parent=31 // pred_check
        %p178 = pneg %p31
      $region34: #{tpu_custom_call.1} parent=31 // pred_check_branch
        %180 = sbr.rel (%p178) target = $region36
      $region35: #{tpu_custom_call.1} parent=31 // pred_region
        %s181 = smul.u32 2, %s11
        %p182 = scmp.lt.s32.totalorder %s181, 5
        %s183 = scalar_select %p182, %s181, 5
        %s184 = smul.addr %s183, 8
        %s185 = scalar_lea.vmem %s0, %s184
        %s186 = smul.u32 2, %s11
      $region36: #{tpu_custom_call.1} parent=31 // pred_fallthru
        _
    $region32: #{tpu_custom_call.1} parent=5 // pred_fallthru
      _
    %p187 = scmp.le.s32.totalorder 1, %s11
    %p188 = scmp.lt.s32.totalorder %s11, 4
    %p189 = pnand %p187, %p188
    %p190 = pneg %p189
    // Predicated region
    $region37: #{tpu_custom_call.1} parent=5 // pred_check
      _
    $region38: #{tpu_custom_call.1} parent=5 // pred_check_branch
      %192 = sbr.rel (%p189) target = $region40
    $region39: #{tpu_custom_call.1} parent=5 // pred_region
      %s193 = ssub.s32 %s11, 1
      %s194 = smul.u32 2, %s16
      %p195 = scmp.lt.s32.totalorder %s194, 5
      %s196 = scalar_select %p195, %s194, 5
      %s197 = smul.addr %s196, 8
      %s198 = scalar_lea.vmem %s0, %s197
      %p199 = pneg %p37
      %p200 = pneg %p34
      %p201 = pneg %p58
      %p202 = pneg %p55
      %p203 = pneg %p79
      %p204 = pneg %p76
      %p205 = pneg %p100
      %p206 = pneg %p97
      %p207 = pneg %p121
      %p208 = pneg %p118
      %p209 = pneg %p147
      %p210 = pneg %p144
      %s211 = smul.u32 2, %s16
      %p212 = scmp.lt.s32.totalorder %s211, 5
      %s213 = scalar_select %p212, %s211, 5
      %s214 = smul.addr %s213, 8
      %s215 = scalar_lea.vmem %s5, %s214
      %s216 = smul.u32 2, %s16
      %p217 = scmp.lt.s32.totalorder %s216, 5
      %s218 = scalar_select %p217, %s216, 5
      %s219 = smul.addr %s218, 8
      %s220 = scalar_lea.vmem %s0, %s219
      %s221 = smul.u32 2, %s16
      %s222 = smul.u32 2, %s16
      %p223 = scmp.lt.s32.totalorder %s222, 5
      %s224 = scalar_select %p223, %s222, 5
      %s225 = smul.addr %s224, 8
      %s226 = scalar_lea.vmem %s5, %s225
      %s227 = smul.u32 2, %s16
      %v228 = vld [vmem:[%s220] sm:$0xff]
      %v229 = vld [vmem:[%s220 + $0x8] sm:$0xff]
      %v230 = vld [vmem:[%s1] sm:$0xff]
      %v231 = vld [vmem:[%s1 + $0x8] sm:$0x3]
      %v232 = vld [vmem:[%s2] sm:$0x1]
      %v234 = vperm.slane %v232, 0
      %vm236 = vcmask 80896
      %v238 = vsel %vm236, %v228, 0
      %v241 = vsel %vm236, %v229, 0
      %vm243 = vcmask 1041408
      %v245 = vsel %vm243, %v231, 0
      %247 = vmatpush.msra.mxu0 0.0
      %248 = vmatpush.msra.mxu0 0.0
      %249 = vmatpush.msra.mxu0 0.0
      %250 = vmatpush.msra.mxu0 0.0
      %251 = vmatpush.msra.mxu0 0.0
      %252 = vmatpush.msra.mxu0 0.0
      %253 = vmatpush.msra.mxu0 0.0
      %254 = vmatpush.msra.mxu0 0.0
      %255 = vmatpush.msra.mxu0 0.0
      %256 = vmatpush.msra.mxu0 0.0
      %257 = vmatpush.msra.mxu0 0.0
      %258 = vmatpush.msra.mxu0 0.0
      %259 = vmatpush.msra.mxu0 0.0
      %260 = vmatpush.msra.mxu0 0.0
      %261 = vmatpush.msra.mxu0 %v245
      %262 = vmatpush.msra.mxu0 %v230
      %263 = vmatmul.f32.gmra.mxu0 %v238
      %v264 = vpop.f32.mrf.mxu0
      %v265 = vadd.f32 %v234, %v264
      %266 = vmatmul.f32.gmra.mxu0 %v241
      %v267 = vpop.f32.mrf.mxu0
      %v268 = vadd.f32 %v234, %v267
      %269 = vdwg.mxu0
      %v270 = vmax.f32 %v265, 0.0
      %v271 = vmax.f32 %v268, 0.0
      %v272 = vld [vmem:[%s3] sm:$0xff]
      %v273 = vld [vmem:[%s3 + $0x8] sm:$0x3]
      %v274 = vld [vmem:[%s4] sm:$0x1]
      %v276 = vperm.slane %v274, 0
      %v279 = vsel %vm236, %v270, 0
      %v282 = vsel %vm236, %v271, 0
      %v285 = vsel %vm243, %v273, 0
      %287 = vmatpush.msra.mxu0 0.0
      %288 = vmatpush.msra.mxu0 0.0
      %289 = vmatpush.msra.mxu0 0.0
      %290 = vmatpush.msra.mxu0 0.0
      %291 = vmatpush.msra.mxu0 0.0
      %292 = vmatpush.msra.mxu0 0.0
      %293 = vmatpush.msra.mxu0 0.0
      %294 = vmatpush.msra.mxu0 0.0
      %295 = vmatpush.msra.mxu0 0.0
      %296 = vmatpush.msra.mxu0 0.0
      %297 = vmatpush.msra.mxu0 0.0
      %298 = vmatpush.msra.mxu0 0.0
      %299 = vmatpush.msra.mxu0 0.0
      %300 = vmatpush.msra.mxu0 0.0
      %301 = vmatpush.msra.mxu0 %v285
      %302 = vmatpush.msra.mxu0 %v272
      %303 = vmatmul.f32.gmra.mxu0 %v279
      %v304 = vpop.f32.mrf.mxu0
      %v305 = vadd.f32 %v276, %v304
      %306 = vmatmul.f32.gmra.mxu0 %v282
      %v307 = vpop.f32.mrf.mxu0
      %v308 = vadd.f32 %v276, %v307
      %309 = vdwg.mxu0
      %vm310 = vcmask 39936
      %311 = vst.msk [vmem:[%s226] sm:$0xff] %vm310, %v305
      %312 = vst.msk [vmem:[%s226 + $0x8] sm:$0xff] %vm310, %v308
      %s313 = smul.u32 2, %s16
      %p314 = scmp.lt.s32.totalorder %s313, 5
      %s315 = scalar_select %p314, %s313, 5
      %s316 = smul.addr %s315, 8
      %s317 = scalar_lea.vmem %s5, %s316
      // Predicated region
      $region41: #{tpu_custom_call.1} parent=39 // pred_check
        %p318 = pneg %p144
      $region42: #{tpu_custom_call.1} parent=39 // pred_check_branch
        %320 = sbr.rel (%p318) target = $region44
      $region43: #{tpu_custom_call.1} parent=39 // pred_region
        %s321 = smul.u32 2, %s16
      $region44: #{tpu_custom_call.1} parent=39 // pred_fallthru
        _
    $region40: #{tpu_custom_call.1} parent=5 // pred_fallthru
      _
    %p322 = scmp.le.s32.totalorder 2, %s11
    // Predicated region
    $region45: #{tpu_custom_call.1} parent=5 // pred_check
      %p323 = pneg %p322
    $region46: #{tpu_custom_call.1} parent=5 // pred_check_branch
      %325 = sbr.rel (%p323) target = $region48
    $region47: #{tpu_custom_call.1} parent=5 // pred_region
      %s326 = ssub.s32 %s11, 2
      // Predicated region
      $region49: #{tpu_custom_call.1} parent=47 // pred_check
        %p327 = pneg %p150
      $region50: #{tpu_custom_call.1} parent=47 // pred_check_branch
        %329 = sbr.rel (%p327) target = $region52
      $region51: #{tpu_custom_call.1} parent=47 // pred_region
        %s330 = smul.u32 2, %s17
        %p331 = scmp.lt.s32.totalorder %s330, 5
        %s332 = scalar_select %p331, %s330, 5
        %s333 = smul.addr %s332, 8
        %s334 = scalar_lea.vmem %s5, %s333
      $region52: #{tpu_custom_call.1} parent=47 // pred_fallthru
        _
    $region48: #{tpu_custom_call.1} parent=5 // pred_fallthru
      _
  $region6: #{tpu_custom_call.1} parent=0 // loop_footer
    %s15 = sadd.s32 1, %s11
  $region7: #{tpu_custom_call.1} parent=0 // loop_footer_branch
    %10 = sbr.rel target = $region3
  $region8: #{tpu_custom_call.1} parent=0 // loop_exit
    _

</llo_original>
